<compile_context>
chip_gen: v6e
topology: v6e:2x2x1
jax: 0.10.0
libtpu: 0.0.40
codegen_flags: <defaults>
</compile_context>

<pallas_src>
import math
import functools

import jax
import jax.numpy as jnp
from jax.experimental import pallas as pl
from jax.experimental.pallas import tpu as pltpu


def _round_up(n, mult):
    return ((n + mult - 1) // mult) * mult


def _arc_margin_kernel(x_ref, wn_ref, label_ref, out_ref, *,
                       s, cos_m, sin_m, th, mm,
                       easy_margin, ls_eps, out_features, tile_c):
    x = x_ref[...].astype(jnp.float32)        # (TB, D)  raw input rows
    wn = wn_ref[...]                          # (TC, D)  pre-normalized, bf16
    label = label_ref[...]                    # (TB, 1)  int32

    # F.normalize(x, dim=1): x * rsqrt(max(sum(x^2), eps^2))  (== x / max(||x||, eps))
    sumsq = jnp.sum(x * x, axis=-1, keepdims=True)
    xn = x * jax.lax.rsqrt(jnp.maximum(sumsq, 1e-24))
    xn = xn.astype(jnp.bfloat16)

    # cosine = normalize(x) @ normalize(W).T on the MXU (bf16 in, f32 accumulate)
    cosine = jax.lax.dot_general(
        xn, wn,
        dimension_numbers=(((1,), (1,)), ((), ())),
        preferred_element_type=jnp.float32,
    )  # (TB, TC)

    # global class indices of this C-tile
    j = pl.program_id(1)
    class_ids = jax.lax.broadcasted_iota(jnp.int32, cosine.shape, 1) + j * tile_c
    is_label = class_ids == label             # (TB, TC) bool, one-hot scatter

    if ls_eps == 0.0:
        # Fast path: only the label column of each row uses phi.
        # Extract cos(theta) at the label column via a masked row reduce.
        cos_t = jnp.sum(jnp.where(is_label, cosine, 0.0), axis=-1, keepdims=True)
        cos_t = jnp.clip(cos_t, -1.0, 1.0)    # guard sqrt against bf16 rounding
        sin_t = jnp.sqrt(1.0 - cos_t * cos_t)
        phi = cos_t * cos_m - sin_t * sin_m
        if easy_margin:
            phi = jnp.where(cos_t > 0.0, phi, cos_t)
        else:
            phi = jnp.where(cos_t > th, phi, cos_t - mm)
        out = jnp.where(is_label, phi, cosine) * s
    else:
        # General (label-smoothed) path: dense phi over the whole tile.
        cos_c = jnp.clip(cosine, -1.0, 1.0)
        sine = jnp.sqrt(1.0 - cos_c * cos_c)
        phi = cos_c * cos_m - sine * sin_m
        if easy_margin:
            phi = jnp.where(cosine > 0.0, phi, cosine)
        else:
            phi = jnp.where(cosine > th, phi, cosine - mm)
        one_hot = is_label.astype(jnp.float32)
        one_hot = (1.0 - ls_eps) * one_hot + ls_eps / out_features
        out = (one_hot * phi + (1.0 - one_hot) * cosine) * s

    out_ref[...] = out.astype(out_ref.dtype)


def arc_margin_product(x, weight, label, *, s=30.0, m=0.5,
                       easy_margin=False, ls_eps=0.0, tb=128, tc=512):
    """Pallas implementation of ArcMarginProduct.forward(input, label)."""
    B, D = x.shape
    C, D2 = weight.shape
    assert D == D2

    # Pre-normalize the class weights once (they are a parameter; changing once
    # per step) and stream them as bf16.
    w_norm = jnp.sqrt(jnp.sum(weight.astype(jnp.float32) ** 2, axis=1, keepdims=True))
    wn = (weight / jnp.maximum(w_norm, 1e-12)).astype(jnp.bfloat16)

    # Tile sizes: sublane-aligned batch tile, lane-dense class tile.
    tb = max(8, _round_up(min(tb, B), 8))
    tc = max(128, _round_up(min(tc, C), 128))

    b_pad = _round_up(B, tb)
    c_pad = _round_up(C, tc)

    if b_pad != B:
        x = jnp.pad(x, ((0, b_pad - B), (0, 0)))
    if c_pad != C:
        wn = jnp.pad(wn, ((0, c_pad - C), (0, 0)))

    label2d = label.astype(jnp.int32).reshape(B, 1)
    if b_pad != B:
        label2d = jnp.pad(label2d, ((0, b_pad - B), (0, 0)), constant_values=-1)

    kernel = functools.partial(
        _arc_margin_kernel,
        s=float(s),
        cos_m=math.cos(m),
        sin_m=math.sin(m),
        th=math.cos(math.pi - m),
        mm=math.sin(math.pi - m) * m,
        easy_margin=bool(easy_margin),
        ls_eps=float(ls_eps),
        out_features=C,
        tile_c=tc,
    )

    grid = (b_pad // tb, c_pad // tc)

    # Rough double-buffered VMEM budget; set an explicit limit (with headroom)
    # only when the tiles exceed the scoped default.
    est = 2 * (tb * D * x.dtype.itemsize + tc * D * 2 + tb * tc * 4 + tb * 4)
    vmem_limit = None
    if est > 24 * 1024 * 1024:
        vmem_limit = int(min(est + (8 << 20), 100 << 20))

    out = pl.pallas_call(
        kernel,
        out_shape=jax.ShapeDtypeStruct((b_pad, c_pad), jnp.float32),
        grid=grid,
        in_specs=[
            pl.BlockSpec((tb, D), lambda i, j: (i, 0)),   # x rows
            pl.BlockSpec((tc, D), lambda i, j: (j, 0)),   # normalized W rows (bf16)
            pl.BlockSpec((tb, 1), lambda i, j: (i, 0)),   # labels
        ],
        out_specs=pl.BlockSpec((tb, tc), lambda i, j: (i, j)),
        compiler_params=pltpu.CompilerParams(
            dimension_semantics=("parallel", "parallel"),
            vmem_limit_bytes=vmem_limit,
        ),
    )(x, wn, label2d)

    return out[:B, :C]


def _reference(x, weight, label, *, s=30.0, m=0.5, easy_margin=False, ls_eps=0.0):
    """Pure-JAX f32 reference mirroring the torch forward."""
    eps = 1e-12
    xn = x / jnp.maximum(jnp.linalg.norm(x, axis=1, keepdims=True), eps)
    wn = weight / jnp.maximum(jnp.linalg.norm(weight, axis=1, keepdims=True), eps)
    cosine = xn @ wn.T
    sine = jnp.sqrt(jnp.clip(1.0 - cosine ** 2, 0.0, None))
    phi = cosine * math.cos(m) - sine * math.sin(m)
    if easy_margin:
        phi = jnp.where(cosine > 0, phi, cosine)
    else:
        phi = jnp.where(cosine > math.cos(math.pi - m),
                        phi, cosine - math.sin(math.pi - m) * m)
    one_hot = jax.nn.one_hot(label, weight.shape[0], dtype=jnp.float32)
    if ls_eps > 0:
        one_hot = (1 - ls_eps) * one_hot + ls_eps / weight.shape[0]
    return (one_hot * phi + (1.0 - one_hot) * cosine) * s


if __name__ == "__main__":
    # Small deterministic problem; tiles chosen so the grid is (2, 2).
    B, IN_FEATURES, OUT_FEATURES = 16, 128, 256
    key = jax.random.PRNGKey(0)
    kx, kw, kl = jax.random.split(key, 3)

    x = jax.random.normal(kx, (B, IN_FEATURES), dtype=jnp.float32)

    # nn.init.xavier_uniform_ on weight (out_features, in_features)
    bound = math.sqrt(6.0 / (IN_FEATURES + OUT_FEATURES))
    weight = jax.random.uniform(kw, (OUT_FEATURES, IN_FEATURES),
                                minval=-bound, maxval=bound, dtype=jnp.float32)

    label = jax.random.randint(kl, (B,), 0, OUT_FEATURES, dtype=jnp.int32)

    configs = [
        dict(ls_eps=0.0, easy_margin=False),   # fast path
        dict(ls_eps=0.1, easy_margin=False),   # label-smoothing dense path
        dict(ls_eps=0.0, easy_margin=True),    # easy-margin branch
    ]
    for cfg in configs:
        out = arc_margin_product(x, weight, label, s=30.0, m=0.5,
                                 tb=8, tc=128, **cfg)
        out = jax.block_until_ready(out)
        ref = _reference(x, weight, label, s=30.0, m=0.5, **cfg)
        assert out.shape == (B, OUT_FEATURES)
        # bf16 matmul operands -> relaxed tolerance vs f32 reference.
        assert jnp.allclose(out, ref, atol=1e-1, rtol=1e-2), f"mismatch for {cfg}"

    print("KERNEL_OK")
</pallas_src>

<mosaic_0001>
module attributes {stable_mosaic.version = 11 : i64} {
  func.func @_arc_margin_kernel(%arg0: i32, %arg1: i32, %arg2: memref<8x128xf32, #tpu.memory_space<vmem>>, %arg3: memref<128x128xbf16, #tpu.memory_space<vmem>>, %arg4: memref<8x1xi32, #tpu.memory_space<vmem>>, %arg5: memref<8x128xf32, #tpu.memory_space<vmem>>) attributes {dimension_semantics = [#tpu.dimension_semantics<parallel>, #tpu.dimension_semantics<parallel>], iteration_bounds = array<i64: 2, 2>, scalar_prefetch = 0 : i64, scratch_operands = 0 : i64, tpu.core_type = #tpu.core_type<tc>, window_params = [{transform_indices = @transform_0, window_bounds = array<i64: 8, 128>}, {transform_indices = @transform_1, window_bounds = array<i64: 128, 128>}, {transform_indices = @transform_2, window_bounds = array<i64: 8, 1>}, {transform_indices = @transform_3, window_bounds = array<i64: 8, 128>}]} {
    %c0 = arith.constant 0 : index
    %c0_0 = arith.constant 0 : index
    %0 = vector.load %arg2[%c0, %c0_0] : memref<8x128xf32, #tpu.memory_space<vmem>>, vector<8x128xf32>
    %c0_1 = arith.constant 0 : index
    %c0_2 = arith.constant 0 : index
    %1 = vector.load %arg3[%c0_1, %c0_2] : memref<128x128xbf16, #tpu.memory_space<vmem>>, vector<128x128xbf16>
    %c0_3 = arith.constant 0 : index
    %c0_4 = arith.constant 0 : index
    %2 = vector.load %arg4[%c0_3, %c0_4] : memref<8x1xi32, #tpu.memory_space<vmem>>, vector<8x1xi32>
    %3 = arith.mulf %0, %0 : vector<8x128xf32>
    %cst = arith.constant dense<0.000000e+00> : vector<8xf32>
    %4 = vector.multi_reduction <add>, %3, %cst [1] : vector<8x128xf32> to vector<8xf32>
    %5 = vector.shape_cast %4 : vector<8xf32> to vector<8x1xf32>
    %cst_5 = arith.constant 1.000000e-24 : f32
    %6 = vector.broadcast %cst_5 : f32 to vector<8x1xf32>
    %7 = arith.maximumf %5, %6 : vector<8x1xf32>
    %8 = math.rsqrt %7 : vector<8x1xf32>
    %9 = vector.broadcast %8 : vector<8x1xf32> to vector<8x128xf32>
    %10 = arith.mulf %0, %9 : vector<8x128xf32>
    %11 = arith.truncf %10 : vector<8x128xf32> to vector<8x128xbf16>
    %cst_6 = arith.constant dense<0.000000e+00> : vector<8x128xf32>
    %12 = tpu.matmul %11, %1, %cst_6 {dimension_numbers = #tpu.dot_dimension_numbers<[1], [1], [0], [0], [0, 0, 1, 0], [], []>} : vector<8x128xbf16>, vector<128x128xbf16>, vector<8x128xf32> -> vector<8x128xf32>
    %13 = tpu.iota {dimensions = array<i32: 1>} : vector<8x128xi32>
    %c128_i32 = arith.constant 128 : i32
    %14 = arith.muli %arg1, %c128_i32 : i32
    %15 = vector.broadcast %14 : i32 to vector<8x128xi32>
    %16 = arith.addi %13, %15 : vector<8x128xi32>
    %17 = vector.broadcast %2 : vector<8x1xi32> to vector<8x128xi32>
    %18 = arith.cmpi eq, %16, %17 : vector<8x128xi32>
    %cst_7 = arith.constant 0.000000e+00 : f32
    %19 = vector.broadcast %cst_7 : f32 to vector<8x128xf32>
    %20 = arith.select %18, %12, %19 : vector<8x128xi1>, vector<8x128xf32>
    %cst_8 = arith.constant dense<0.000000e+00> : vector<8xf32>
    %21 = vector.multi_reduction <add>, %20, %cst_8 [1] : vector<8x128xf32> to vector<8xf32>
    %22 = vector.shape_cast %21 : vector<8xf32> to vector<8x1xf32>
    %cst_9 = arith.constant -1.000000e+00 : f32
    %cst_10 = arith.constant 1.000000e+00 : f32
    %23 = vector.broadcast %cst_9 : f32 to vector<8x1xf32>
    %24 = arith.maximumf %23, %22 : vector<8x1xf32>
    %25 = vector.broadcast %cst_10 : f32 to vector<8x1xf32>
    %26 = arith.minimumf %25, %24 : vector<8x1xf32>
    %27 = arith.mulf %26, %26 : vector<8x1xf32>
    %cst_11 = arith.constant 1.000000e+00 : f32
    %28 = vector.broadcast %cst_11 : f32 to vector<8x1xf32>
    %29 = arith.subf %28, %27 : vector<8x1xf32>
    %30 = math.sqrt %29 : vector<8x1xf32>
    %cst_12 = arith.constant 0.87758255 : f32
    %31 = vector.broadcast %cst_12 : f32 to vector<8x1xf32>
    %32 = arith.mulf %26, %31 : vector<8x1xf32>
    %cst_13 = arith.constant 0.47942555 : f32
    %33 = vector.broadcast %cst_13 : f32 to vector<8x1xf32>
    %34 = arith.mulf %30, %33 : vector<8x1xf32>
    %35 = arith.subf %32, %34 : vector<8x1xf32>
    %cst_14 = arith.constant -0.87758255 : f32
    %36 = vector.broadcast %cst_14 : f32 to vector<8x1xf32>
    %37 = arith.cmpf ogt, %26, %36 : vector<8x1xf32>
    %cst_15 = arith.constant 0.239712775 : f32
    %38 = vector.broadcast %cst_15 : f32 to vector<8x1xf32>
    %39 = arith.subf %26, %38 : vector<8x1xf32>
    %40 = arith.select %37, %35, %39 : vector<8x1xi1>, vector<8x1xf32>
    %41 = vector.shape_cast %40 : vector<8x1xf32> to vector<8x1xf32>
    %42 = vector.broadcast %41 : vector<8x1xf32> to vector<8x128xf32>
    %43 = arith.select %18, %42, %12 : vector<8x128xi1>, vector<8x128xf32>
    %cst_16 = arith.constant 3.000000e+01 : f32
    %44 = vector.broadcast %cst_16 : f32 to vector<8x128xf32>
    %45 = arith.mulf %43, %44 : vector<8x128xf32>
    %c0_17 = arith.constant 0 : index
    %c0_18 = arith.constant 0 : index
    %46 = vector.load %arg5[%c0_17, %c0_18] : memref<8x128xf32, #tpu.memory_space<vmem>>, vector<8x128xf32>
    tpu.vector_store %arg5[%c0_17, %c0_18], %45 {strides = array<i32>} : memref<8x128xf32, #tpu.memory_space<vmem>>, vector<8x128xf32>,
    return
  }
  func.func @transform_0(%arg0: i32, %arg1: i32) -> (i32, i32) {
    %c0_i32 = arith.constant 0 : i32
    %c0_i32_0 = arith.constant 0 : i32
    return %arg0, %c0_i32 : i32, i32
  }
  func.func @transform_1(%arg0: i32, %arg1: i32) -> (i32, i32) {
    %c0_i32 = arith.constant 0 : i32
    %c0_i32_0 = arith.constant 0 : i32
    return %arg1, %c0_i32 : i32, i32
  }
  func.func @transform_2(%arg0: i32, %arg1: i32) -> (i32, i32) {
    %c0_i32 = arith.constant 0 : i32
    %c0_i32_0 = arith.constant 0 : i32
    return %arg0, %c0_i32 : i32, i32
  }
  func.func @transform_3(%arg0: i32, %arg1: i32) -> (i32, i32) {
    %c0_i32 = arith.constant 0 : i32
    return %arg0, %arg1 : i32, i32
  }
}

</mosaic_0001>

<llo_original>
// kernel: tpu_custom_call.1
$region0: #{tpu_custom_call.1}
  #allocation0 [shape = 'u32[]', space=smem, size = 0x4, offset = 0x4, fixed_abs, tag = 'smem constant byte address 0x4 - core index']
  #allocation1 [shape = 'u32[144,128]{1,0:T(1,128)}', space=vmem, size = 0x12000, scoped, tag = 'internal scratch']
  %s0 = inlined_call_operand.vmem [shape: f32[16,128], index: 0, kind: input, shape index: {}]
  %s1 = inlined_call_operand.hbm [shape: bf16[256,128], index: 1, kind: input, shape index: {}]
  %s2 = inlined_call_operand.vmem [shape: s32[16,1], index: 2, kind: input, shape index: {}]
  %s3 = inlined_call_operand.hbm [shape: f32[16,256], index: 3, kind: output, shape index: {}]
  %s4 = sld [smem:[#allocation0]]
  $region49: #{tpu_custom_call.1} parent=0
    _
  %s6 = ssub.s32 1, %s4
  %s7 = scalar_select 0, %s6, %s4
  $region1: #{tpu_custom_call.1} parent=0
    #allocation2 [shape = 'u8[65536]{0}', space=vmem, size = 0x10000, scoped, tag = 'input window, operand 1']
    #allocation3 [shape = 's32[2]{0}', space=sflag, size = 0x8, scoped, tag = 'scoped memory for tpu_custom_call.1']
    #allocation4 [shape = 's32[2]{0}', space=sflag, size = 0x8, scoped, tag = 'scoped memory for tpu_custom_call.1']
    #allocation5 [shape = 'u8[8192]{0}', space=vmem, size = 0x2000, scoped, tag = 'output window, operand 0']
    %8 = vsyncpa [#allocation3], 0
    %s9 = scalar_lea.sflag [#allocation3], 1
    %10 = vsyncpa %s9, 0
    %11 = vsyncpa [#allocation4], 0
    %s12 = scalar_lea.sflag [#allocation4], 1
    %13 = vsyncpa %s12, 0
    loop: start=0, step=1, limit=6
    $region2: #{tpu_custom_call.1} parent=1 // loop_pre_header
      _
    $region3: #{tpu_custom_call.1} parent=1 // loop_header
      %s15 = sphi 0, %s19
      %p16 = scmp.ge.s32.totalorder %s15, 6
      %s22 = sphi 0, %s34
      %s23 = sphi 0, %s30
      %s24 = sphi 0, %s22
      %s25 = sphi 0, %s23
      %s26 = sphi 0, %s24
      %s27 = sphi 0, %s25
      %s37 = sphi 0, %s39
      %s40 = sphi 0, %s37
      %s41 = sphi 0, %s40
      %s57 = sphi 0, %s41
      %s63 = sphi 0, %s65
      %s66 = sphi 0, %s63
      %s67 = sphi 0, %s66
      %s83 = sphi 0, %s67
      %s89 = sphi 0, %s91
      %s92 = sphi 0, %s89
      %s93 = sphi 0, %s92
      %s109 = sphi 0, %s93
      %s117 = sphi 0, %s119
      %s120 = sphi 0, %s117
      %s121 = sphi 0, %s120
      %s137 = sphi 0, %s121
    $region4: #{tpu_custom_call.1} parent=1 // loop_header_branch
      %18 = sbr.rel (%p16) target = $region8
    $region5: #{tpu_custom_call.1} parent=1 // loop_body
      %s20 = ssub.s32 %s15, 1
      %s21 = ssub.s32 %s15, 2
      %s28 = sadd.s32 1, %s23
      %p29 = scmp.ge.s32.totalorder %s28, 2
      %s30 = scalar_select %p29, 0, %s28
      %s31 = sadd.s32 1, %s22
      %s32 = scalar_select %p29, %s31, %s22
      %p33 = scmp.ge.s32.totalorder %s32, 2
      %s34 = scalar_select %p33, 0, %s32
      %s35 = ssub.s32 %s22, %s34
      %p36 = scmp.eq.s32.totalorder %s35, 0
      %s38 = sadd.s32 %s37, 1
      %s39 = scalar_select %p36, %s37, %s38
      %p42 = pneg %p36
      %p43 = scmp.eq.s32.totalorder %s15, 3
      %p44 = por %p42, %p43
      %p45 = scmp.ne.s32.totalorder %s37, %s40
      %p46 = scmp.eq.s32.totalorder %s15, 0
      %p47 = por %p45, %p46
      %p48 = scmp.ne.s32.totalorder %s37, %s40
      %p49 = scmp.eq.s32.totalorder %s20, 3
      %p50 = por %p48, %p49
      %p51 = scmp.ne.s32.totalorder %s40, %s41
      %p52 = scmp.eq.s32.totalorder %s20, 0
      %p53 = por %p51, %p52
      %p54 = scmp.ne.s32.totalorder %s40, %s41
      %p55 = scmp.eq.s32.totalorder %s21, 3
      %p56 = por %p54, %p55
      %p58 = scmp.ne.s32.totalorder %s41, %s57
      %p59 = scmp.eq.s32.totalorder %s21, 0
      %p60 = por %p58, %p59
      %s61 = ssub.s32 %s23, %s30
      %p62 = scmp.eq.s32.totalorder %s61, 0
      %s64 = sadd.s32 %s63, 1
      %s65 = scalar_select %p62, %s63, %s64
      %p68 = pneg %p62
      %p69 = scmp.eq.s32.totalorder %s15, 3
      %p70 = por %p68, %p69
      %p71 = scmp.ne.s32.totalorder %s63, %s66
      %p72 = scmp.eq.s32.totalorder %s15, 0
      %p73 = por %p71, %p72
      %p74 = scmp.ne.s32.totalorder %s63, %s66
      %p75 = scmp.eq.s32.totalorder %s20, 3
      %p76 = por %p74, %p75
      %p77 = scmp.ne.s32.totalorder %s66, %s67
      %p78 = scmp.eq.s32.totalorder %s20, 0
      %p79 = por %p77, %p78
      %p80 = scmp.ne.s32.totalorder %s66, %s67
      %p81 = scmp.eq.s32.totalorder %s21, 3
      %p82 = por %p80, %p81
      %p84 = scmp.ne.s32.totalorder %s67, %s83
      %p85 = scmp.eq.s32.totalorder %s21, 0
      %p86 = por %p84, %p85
      %s87 = ssub.s32 %s22, %s34
      %p88 = scmp.eq.s32.totalorder %s87, 0
      %s90 = sadd.s32 %s89, 1
      %s91 = scalar_select %p88, %s89, %s90
      %p94 = pneg %p88
      %p95 = scmp.eq.s32.totalorder %s15, 3
      %p96 = por %p94, %p95
      %p97 = scmp.ne.s32.totalorder %s89, %s92
      %p98 = scmp.eq.s32.totalorder %s15, 0
      %p99 = por %p97, %p98
      %p100 = scmp.ne.s32.totalorder %s89, %s92
      %p101 = scmp.eq.s32.totalorder %s20, 3
      %p102 = por %p100, %p101
      %p103 = scmp.ne.s32.totalorder %s92, %s93
      %p104 = scmp.eq.s32.totalorder %s20, 0
      %p105 = por %p103, %p104
      %p106 = scmp.ne.s32.totalorder %s92, %s93
      %p107 = scmp.eq.s32.totalorder %s21, 3
      %p108 = por %p106, %p107
      %p110 = scmp.ne.s32.totalorder %s93, %s109
      %p111 = scmp.eq.s32.totalorder %s21, 0
      %p112 = por %p110, %p111
      %s113 = ssub.s32 %s22, %s34
      %s114 = ssub.s32 %s23, %s30
      %s115 = sor.u32 %s113, %s114
      %p116 = scmp.eq.s32.totalorder %s115, 0
      %s118 = sadd.s32 %s117, 1
      %s119 = scalar_select %p116, %s117, %s118
      %p122 = pneg %p116
      %p123 = scmp.eq.s32.totalorder %s15, 3
      %p124 = por %p122, %p123
      %p125 = scmp.ne.s32.totalorder %s117, %s120
      %p126 = scmp.eq.s32.totalorder %s15, 0
      %p127 = por %p125, %p126
      %p128 = scmp.ne.s32.totalorder %s117, %s120
      %p129 = scmp.eq.s32.totalorder %s20, 3
      %p130 = por %p128, %p129
      %p131 = scmp.ne.s32.totalorder %s120, %s121
      %p132 = scmp.eq.s32.totalorder %s20, 0
      %p133 = por %p131, %p132
      %p134 = scmp.ne.s32.totalorder %s120, %s121
      %p135 = scmp.eq.s32.totalorder %s21, 3
      %p136 = por %p134, %p135
      %p138 = scmp.ne.s32.totalorder %s121, %s137
      %p139 = scmp.eq.s32.totalorder %s21, 0
      %p140 = por %p138, %p139
      %p141 = scmp.le.s32.totalorder 1, %s15
      %p142 = scmp.lt.s32.totalorder %s15, 5
      %p143 = pnand %p141, %p142
      %p144 = pneg %p143
      // Predicated region
      $region9: #{tpu_custom_call.1} parent=5 // pred_check
        _
      $region10: #{tpu_custom_call.1} parent=5 // pred_check_branch
        %146 = sbr.rel (%p143) target = $region12
      $region11: #{tpu_custom_call.1} parent=5 // pred_region
        %s147 = ssub.s32 %s15, 1
      $region12: #{tpu_custom_call.1} parent=5 // pred_fallthru
        _
      %p148 = scmp.lt.s32.totalorder %s15, 4
      // Predicated region
      $region13: #{tpu_custom_call.1} parent=5 // pred_check
        %p149 = pneg %p148
      $region14: #{tpu_custom_call.1} parent=5 // pred_check_branch
        %151 = sbr.rel (%p149) target = $region16
      $region15: #{tpu_custom_call.1} parent=5 // pred_region
        // Predicated region
        $region17: #{tpu_custom_call.1} parent=15 // pred_check
          %p152 = pneg %p47
        $region18: #{tpu_custom_call.1} parent=15 // pred_check_branch
          %154 = sbr.rel (%p152) target = $region20
        $region19: #{tpu_custom_call.1} parent=15 // pred_region
          %p155 = scmp.lt.s32.totalorder %s22, 1
          %s156 = scalar_select %p155, %s22, 1
          %s157 = smul.addr %s156, 8
          %s158 = scalar_lea.vmem %s0, %s157
        $region20: #{tpu_custom_call.1} parent=15 // pred_fallthru
          _
        // Predicated region
        $region21: #{tpu_custom_call.1} parent=15 // pred_check
          %p159 = pneg %p73
        $region22: #{tpu_custom_call.1} parent=15 // pred_check_branch
          %161 = sbr.rel (%p159) target = $region24
        $region23: #{tpu_custom_call.1} parent=15 // pred_region
          %s162 = sand.u32 %s63, 1
          %s163 = scalar_lea.sflag [#allocation3], %s162
          %s164 = sand.u32 %s63, 1
          %s165 = smul.addr %s164, 64
          %s166 = scalar_lea.vmem [#allocation2], %s165
          %s167 = smul.u32 16, %s23
          %s169 = ssub.s32 1024, 1024
          %170 = vsyncadd %s163, %s169
          %s171 = smul.addr %s167, 64
          %s172 = scalar_lea.hbm %s1, %s171
          %s173 = sshll.u32 %s166, 4
          %s174 = int_to_ptr.vmem [resolvable:$true] %s173
          %179 = dma.hbm_to_vmem [thread:$0]  %s172, 1024, %s174, %s163, 64, 64, 4
        $region24: #{tpu_custom_call.1} parent=15 // pred_fallthru
          _
        // Predicated region
        $region25: #{tpu_custom_call.1} parent=15 // pred_check
          %p180 = pneg %p99
        $region26: #{tpu_custom_call.1} parent=15 // pred_check_branch
          %182 = sbr.rel (%p180) target = $region28
        $region27: #{tpu_custom_call.1} parent=15 // pred_region
          %p183 = scmp.lt.s32.totalorder %s22, 1
          %s184 = scalar_select %p183, %s22, 1
          %s185 = smul.addr %s184, 8
          %s186 = scalar_lea.vmem %s2, %s185
        $region28: #{tpu_custom_call.1} parent=15 // pred_fallthru
          _
      $region16: #{tpu_custom_call.1} parent=5 // pred_fallthru
        _
      %p187 = scmp.le.s32.totalorder 1, %s15
      %p188 = scmp.lt.s32.totalorder %s15, 5
      %p189 = pnand %p187, %p188
      %p190 = pneg %p189
      // Predicated region
      $region29: #{tpu_custom_call.1} parent=5 // pred_check
        _
      $region30: #{tpu_custom_call.1} parent=5 // pred_check_branch
        %192 = sbr.rel (%p189) target = $region32
      $region31: #{tpu_custom_call.1} parent=5 // pred_region
        %s193 = ssub.s32 %s15, 1
        %s194 = sand.u32 %s66, 1
        %s195 = scalar_lea.sflag [#allocation3], %s194
        %s196 = sand.u32 %s66, 1
        %s197 = smul.addr %s196, 64
        %s198 = scalar_lea.vmem [#allocation2], %s197
        // Predicated region
        $region33: #{tpu_custom_call.1} parent=31 // pred_check
          %p199 = pneg %p79
        $region34: #{tpu_custom_call.1} parent=31 // pred_check_branch
          %201 = sbr.rel (%p199) target = $region36
        $region35: #{tpu_custom_call.1} parent=31 // pred_region
          %202 = dma.done %s195, 1024
        $region36: #{tpu_custom_call.1} parent=31 // pred_fallthru
          _
        %p203 = scmp.lt.s32.totalorder %s24, 1
        %s204 = scalar_select %p203, %s24, 1
        %s205 = smul.addr %s204, 8
        %s206 = scalar_lea.vmem %s0, %s205
        %p207 = pneg %p53
        %p208 = pneg %p50
        %s209 = sand.u32 %s66, 1
        %s210 = scalar_lea.sflag [#allocation3], %s209
        %s211 = sand.u32 %s66, 1
        %s212 = smul.addr %s211, 64
        %s213 = scalar_lea.vmem [#allocation2], %s212
        %p214 = pneg %p79
        %p215 = pneg %p76
        %p216 = scmp.lt.s32.totalorder %s24, 1
        %s217 = scalar_select %p216, %s24, 1
        %s218 = smul.addr %s217, 8
        %s219 = scalar_lea.vmem %s2, %s218
        %p220 = pneg %p105
        %p221 = pneg %p102
        %p222 = pneg %p133
        %p223 = pneg %p130
        %s224 = sand.u32 %s120, 1
        %s225 = scalar_lea.sflag [#allocation4], %s224
        %s226 = sand.u32 %s120, 1
        %s227 = smul.addr %s226, 8
        %s228 = scalar_lea.vmem [#allocation5], %s227
        %p229 = scmp.lt.s32.totalorder %s24, 1
        %s230 = scalar_select %p229, %s24, 1
        %s231 = smul.addr %s230, 8
        %s232 = scalar_lea.vmem %s0, %s231
        %s233 = smul.u32 16, %s25
        %p234 = scmp.lt.s32.totalorder %s24, 1
        %s235 = scalar_select %p234, %s24, 1
        %s236 = smul.addr %s235, 8
        %s237 = scalar_lea.vmem %s2, %s236
        %v239 = vld [vmem:[%s232] sm:$0xff]
        %v240 = vld [vmem:[%s198] sm:$0xf]
        %v241 = vld [vmem:[%s198 + $0x4] sm:$0xf]
        %v242 = vld [vmem:[%s198 + $0x8] sm:$0xf]
        %v243 = vld [vmem:[%s198 + $0xc] sm:$0xf]
        %v244 = vld [vmem:[%s198 + $0x10] sm:$0xf]
        %v245 = vld [vmem:[%s198 + $0x14] sm:$0xf]
        %v246 = vld [vmem:[%s198 + $0x18] sm:$0xf]
        %v247 = vld [vmem:[%s198 + $0x1c] sm:$0xf]
        %v248 = vld [vmem:[%s198 + $0x20] sm:$0xf]
        %v249 = vld [vmem:[%s198 + $0x24] sm:$0xf]
        %v250 = vld [vmem:[%s198 + $0x28] sm:$0xf]
        %v251 = vld [vmem:[%s198 + $0x2c] sm:$0xf]
        %v252 = vld [vmem:[%s198 + $0x30] sm:$0xf]
        %v253 = vld [vmem:[%s198 + $0x34] sm:$0xf]
        %v254 = vld [vmem:[%s198 + $0x38] sm:$0xf]
        %v255 = vld [vmem:[%s198 + $0x3c] sm:$0xf]
        %v256 = vld [vmem:[%s237] sm:$0xff]
        %v257 = vmul.f32 %v239, %v239
        %258 = vadd.xlane.f32.xlu0 %v257
        %v259 = vpop.xlane.xlu0 %258
        %v260 = vmax.f32 %v259, 1e-24
        %v261 = vrsqrt.pop %v260
        %v262 = vmul.f32 %v239, %v261
        %v263 = vpack.c.bf16 %v262, %v262
        %v280 = vunpack.c.l.b16 %v240
        %v281 = vunpack.c.l.b16 %v241
        %v282 = vunpack.c.l.b16 %v242
        %v283 = vunpack.c.l.b16 %v243
        %v284 = vunpack.c.l.b16 %v244
        %v285 = vunpack.c.l.b16 %v245
        %v286 = vunpack.c.l.b16 %v246
        %v287 = vunpack.c.l.b16 %v247
        %v288 = vunpack.c.l.b16 %v248
        %v289 = vunpack.c.l.b16 %v249
        %v290 = vunpack.c.l.b16 %v250
        %v291 = vunpack.c.l.b16 %v251
        %v292 = vunpack.c.l.b16 %v252
        %v293 = vunpack.c.l.b16 %v253
        %v294 = vunpack.c.l.b16 %v254
        %v295 = vunpack.c.l.b16 %v255
        %v296 = vpack.c.b16 %v281, %v280
        %v297 = vpack.c.b16 %v283, %v282
        %v298 = vpack.c.b16 %v285, %v284
        %v299 = vpack.c.b16 %v287, %v286
        %v300 = vpack.c.b16 %v289, %v288
        %v301 = vpack.c.b16 %v291, %v290
        %v302 = vpack.c.b16 %v293, %v292
        %v303 = vpack.c.b16 %v295, %v294
        %312 = vmatprep.subr.bf16.mxu0 0
        %313 = vmatpush1.bf16.xpose.msra.mxu0 %v303
        %314 = vmatprep.subr.bf16.mxu0 0
        %315 = vmatpush1.bf16.xpose.msra.mxu0 %v302
        %316 = vmatprep.subr.bf16.mxu0 0
        %317 = vmatpush1.bf16.xpose.msra.mxu0 %v301
        %318 = vmatprep.subr.bf16.mxu0 0
        %319 = vmatpush1.bf16.xpose.msra.mxu0 %v300
        %320 = vmatprep.subr.bf16.mxu0 0
        %321 = vmatpush1.bf16.xpose.msra.mxu0 %v299
        %322 = vmatprep.subr.bf16.mxu0 0
        %323 = vmatpush1.bf16.xpose.msra.mxu0 %v298
        %324 = vmatprep.subr.bf16.mxu0 0
        %325 = vmatpush1.bf16.xpose.msra.mxu0 %v297
        %326 = vmatprep.subr.bf16.mxu0 0
        %327 = vmatpush1.bf16.xpose.msra.mxu0 %v296
        %328 = vmatprep.subr.bf16.mxu0 0
        %329 = vmatpush2.bf16.xpose.msra.mxu0 0
        %330 = vmatprep.subr.bf16.mxu0 0
        %331 = vmatpush2.bf16.xpose.msra.mxu0 0
        %332 = vmatprep.subr.bf16.mxu0 0
        %333 = vmatpush2.bf16.xpose.msra.mxu0 0
        %334 = vmatprep.subr.bf16.mxu0 0
        %335 = vmatpush2.bf16.xpose.msra.mxu0 0
        %336 = vmatprep.subr.bf16.mxu0 0
        %337 = vmatpush2.bf16.xpose.msra.mxu0 0
        %338 = vmatprep.subr.bf16.mxu0 0
        %339 = vmatpush2.bf16.xpose.msra.mxu0 0
        %340 = vmatprep.subr.bf16.mxu0 0
        %341 = vmatpush2.bf16.xpose.msra.mxu0 0
        %342 = vmatprep.subr.bf16.mxu0 0
        %343 = vmatpush2.bf16.xpose.msra.mxu0 0
        %344 = vmatprep.mubr.bf16.mxu0 0
        %345 = vmatmul.mubr.bf16.gmra.mxu0 %v263
        %v346 = vpop.f32.mrf.mxu0
        %v347 = vadd.f32 0.0, %v346
        %v348 = vpop.f32.mrf.mxu0
        %v349 = vpop.f32.mrf.mxu0
        %v350 = vpop.f32.mrf.mxu0
        %351 = vdwg.mxu0
        %v352 = vlaneseq
        %v353 = vand.u32 %v352, 127
        %s354 = smul.u32 %s25, 128
        %v355 = vstv %s354
        %v356 = vadd.s32 %v353, %v355
        %357 = vset.pattern.permute.xlu0 0
        %358 = vperm.xlu0 %357, %v256
        %v359 = vpop.permute.xlu0 %358
        %vm360 = vcmp.eq.s32.totalorder %v356, %v359
        %v361 = vsel %vm360, %v347, 0.0
        %362 = vadd.xlane.f32.xlu0 %v361
        %v363 = vpop.xlane.xlu0 %362
        %v364 = vmax.f32 %v363, -1.0
        %v365 = vmin.f32 %v364, 1.0
        %v366 = vmul.f32 %v365, %v365
        %v367 = vsub.f32 1.0, %v366
        %v368 = vrsqrt.pop %v367
        %v369 = vmul.f32 %v367, %v368
        %vm370 = vcmp.eq.f32.partialorder %v367, inf
        %v371 = vsel %vm370, %v367, %v369
        %vm372 = vcmp.eq.f32.partialorder %v367, 0.0
        %v373 = vand.u32 %v367, 2147483648
        %v374 = vsel %vm372, %v373, %v371
        %v375 = vmul.f32 %v365, 0.87758255
        %v376 = vmul.f32 %v374, 0.47942555
        %v377 = vsub.f32 %v375, %v376
        %vm378 = vcmp.gt.f32.partialorder %v365, -0.87758255
        %v379 = vsub.f32 %v365, 0.23971277
        %v380 = vsel %vm378, %v377, %v379
        %v381 = vsel %vm360, %v380, %v347
        %v382 = vmul.f32 %v381, 30.0
        %383 = vst [vmem:[%s228] sm:$0xff] %v382
        %s384 = sand.u32 %s120, 1
        %s385 = scalar_lea.sflag [#allocation4], %s384
        %s386 = sand.u32 %s120, 1
        %s387 = smul.addr %s386, 8
        %s388 = scalar_lea.vmem [#allocation5], %s387
        // Predicated region
        $region37: #{tpu_custom_call.1} parent=31 // pred_check
          %p389 = pneg %p130
        $region38: #{tpu_custom_call.1} parent=31 // pred_check_branch
          %391 = sbr.rel (%p389) target = $region40
        $region39: #{tpu_custom_call.1} parent=31 // pred_region
          %s393 = ssub.s32 128, 128
          %394 = vsyncadd %s385, %s393
          %s395 = smul.addr %s24, 2
          %s396 = sadd.s32 %s25, %s395
          %s397 = smul.addr %s396, 128
          %s398 = scalar_lea.hbm %s3, %s397
          %s400 = sshll.u32 %s388, 4
          %s401 = int_to_ptr.vmem [resolvable:$true] %s400
          %403 = dma.vmem_to_hbm [thread:$0]  %s401, 128, %s398, %s385
        $region40: #{tpu_custom_call.1} parent=31 // pred_fallthru
          _
      $region32: #{tpu_custom_call.1} parent=5 // pred_fallthru
        _
      %p404 = scmp.le.s32.totalorder 2, %s15
      // Predicated region
      $region41: #{tpu_custom_call.1} parent=5 // pred_check
        %p405 = pneg %p404
      $region42: #{tpu_custom_call.1} parent=5 // pred_check_branch
        %407 = sbr.rel (%p405) target = $region44
      $region43: #{tpu_custom_call.1} parent=5 // pred_region
        %s408 = ssub.s32 %s15, 2
        // Predicated region
        $region45: #{tpu_custom_call.1} parent=43 // pred_check
          %p409 = pneg %p136
        $region46: #{tpu_custom_call.1} parent=43 // pred_check_branch
          %411 = sbr.rel (%p409) target = $region48
        $region47: #{tpu_custom_call.1} parent=43 // pred_region
          %s412 = sand.u32 %s121, 1
          %s413 = scalar_lea.sflag [#allocation4], %s412
          %s414 = sand.u32 %s121, 1
          %s415 = smul.addr %s414, 8
          %s416 = scalar_lea.vmem [#allocation5], %s415
          %417 = dma.done %s413, 128
        $region48: #{tpu_custom_call.1} parent=43 // pred_fallthru
          _
      $region44: #{tpu_custom_call.1} parent=5 // pred_fallthru
        _
    $region6: #{tpu_custom_call.1} parent=1 // loop_footer
      %s19 = sadd.s32 1, %s15
    $region7: #{tpu_custom_call.1} parent=1 // loop_footer_branch
      %14 = sbr.rel target = $region3
    $region8: #{tpu_custom_call.1} parent=1 // loop_exit
      _
    %418 = vsyncpa [#allocation3], 1
    %s419 = scalar_lea.sflag [#allocation3], 1
    %420 = vsyncpa %s419, 1
    %421 = vsyncpa [#allocation4], 1
    %s422 = scalar_lea.sflag [#allocation4], 1
    %423 = vsyncpa %s422, 1

</llo_original>
